<compile_context>
chip_gen: v7x
topology: tpu7x:2x2x1
jax: 0.10.0
libtpu: 0.0.40
codegen_flags: <defaults>
</compile_context>

<pallas_src>
import math

import jax
import jax.numpy as jnp
from jax.experimental import pallas as pl
from jax.experimental.pallas import tpu as pltpu


def _stacked_gru_kernel(x_ref, h0_ref, w_ref, b_ref, h1_ref, cur_ref):
    """One grid step == one GRU layer.

    x_ref   : (B, Dmax)        layer-0 input, zero-padded to Dmax on features
    h0_ref  : (1, B, H)        this layer's previous hidden state
    w_ref   : (1, Dmax+H, 4H)  merged [input|hidden] -> [r|z|i_n|h_n] weight
    b_ref   : (1, 1, 4H)       combined bias [b_ir+b_hr, b_iz+b_hz, b_in, b_hn]
    h1_ref  : (1, B, H)        this layer's new hidden state (output block)
    cur_ref : (B, Dmax+H)      VMEM scratch, persists across grid steps:
                               cols [0:Dmax] = current layer input, [Dmax:] = h
    """
    l = pl.program_id(0)
    H = h0_ref.shape[2]
    Dmax = x_ref.shape[1]

    # Layer 0: seed the carry buffer with the (padded) external input.
    @pl.when(l == 0)
    def _():
        cur_ref[:, :Dmax] = x_ref[...].astype(jnp.float32)

    # Place this layer's hidden state next to the input -> one [x|h] operand.
    h = h0_ref[0].astype(jnp.float32)                 # (B, H); no-op cast for f32
    cur_ref[:, Dmax:] = h

    # Single MXU op for both GRUCell matmuls, plus one combined bias add.
    g = jnp.dot(cur_ref[...], w_ref[0],
                preferred_element_type=jnp.float32) + b_ref[0]   # (B, 4H)

    r = jax.nn.sigmoid(g[:, 0:H])                     # i_r + h_r + b_ir + b_hr
    z = jax.nn.sigmoid(g[:, H:2 * H])                 # i_z + h_z + b_iz + b_hz
    n = jnp.tanh(g[:, 2 * H:3 * H] + r * g[:, 3 * H:4 * H])  # i_n+b_in + r*(h_n+b_hn)
    h_new = n + z * (h - n)                           # == (1-z)*n + z*h

    h1_ref[0] = h_new.astype(h1_ref.dtype)

    # Carry this layer's output as the next layer's input. Columns [H:Dmax] may
    # hold stale data, but the next layer's merged weight has zero rows there.
    @pl.when(l + 1 < pl.num_programs(0))
    def _():
        cur_ref[:, :H] = h_new


def stacked_gru_forward(x, h_0, fused):
    """StackedGRU.forward: returns (top_layer_output, stacked_new_hidden).

    x: (B, input_size), h_0: (L, B, H), fused: dict with stacked merged weights.
    """
    L, B, H = h_0.shape
    Dmax = fused["w"].shape[1] - H

    # Zero-pad layer-0 input features to Dmax (matching zero weight rows).
    d_in = x.shape[1]
    if d_in < Dmax:
        x = jnp.pad(x, ((0, 0), (0, Dmax - d_in)))

    h_1 = pl.pallas_call(
        _stacked_gru_kernel,
        out_shape=jax.ShapeDtypeStruct((L, B, H), x.dtype),
        grid_spec=pltpu.PrefetchScalarGridSpec(
            num_scalar_prefetch=0,
            grid=(L,),
            in_specs=[
                pl.BlockSpec((B, Dmax), lambda l: (0, 0)),                # x (resident)
                pl.BlockSpec((1, B, H), lambda l: (l, 0, 0)),             # h_0[l]
                pl.BlockSpec((1, Dmax + H, 4 * H), lambda l: (l, 0, 0)),  # W_comb[l]
                pl.BlockSpec((1, 1, 4 * H), lambda l: (l, 0, 0)),         # b_comb[l]
            ],
            out_specs=pl.BlockSpec((1, B, H), lambda l: (l, 0, 0)),
            scratch_shapes=[pltpu.VMEM((B, Dmax + H), jnp.float32)],
        ),
        # Sequential dependency layer->layer through the scratch carry.
        compiler_params=pltpu.CompilerParams(dimension_semantics=("arbitrary",)),
    )(x, h_0, fused["w"], fused["b"])

    # TODO(synk): training-mode dropout between layers not applied; inference is identity.
    return h_1[-1], h_1


def init_stacked_gru_params(key, num_layers, input_size, rnn_size, dtype=jnp.float32):
    """PyTorch-layout GRUCell params: U(-1/sqrt(H), 1/sqrt(H)), gate order [r|z|n]."""
    params = []
    bound = 1.0 / math.sqrt(rnn_size)
    d_in = input_size
    for _ in range(num_layers):
        key, k1, k2, k3, k4 = jax.random.split(key, 5)
        params.append({
            "w_ih": jax.random.uniform(k1, (3 * rnn_size, d_in), dtype, -bound, bound),
            "w_hh": jax.random.uniform(k2, (3 * rnn_size, rnn_size), dtype, -bound, bound),
            "b_ih": jax.random.uniform(k3, (3 * rnn_size,), dtype, -bound, bound),
            "b_hh": jax.random.uniform(k4, (3 * rnn_size,), dtype, -bound, bound),
        })
        d_in = rnn_size
    return params


def fuse_stacked_gru_params(params, input_size, rnn_size):
    """Build stacked merged weights/biases (done once at init, not per call).

    Per layer:
      W_comb (Dmax+H, 4H): rows [0:d_in]   -> W_ih^T  into cols [r|z|i_n],
                           rows [Dmax: ]   -> W_hh^T  into cols [r|z|  |h_n],
                           all other rows zero.
      b_comb (1, 4H)     : [b_ir+b_hr, b_iz+b_hz, b_in, b_hn]
    """
    H = rnn_size
    Dmax = max(input_size, rnn_size)
    Ws, Bs = [], []
    for p in params:
        w_ih_t = p["w_ih"].T          # (d_in, 3H)
        w_hh_t = p["w_hh"].T          # (H,    3H)
        b_ih, b_hh = p["b_ih"], p["b_hh"]
        d_in = w_ih_t.shape[0]

        W = jnp.zeros((Dmax + H, 4 * H), w_ih_t.dtype)
        W = W.at[:d_in, :2 * H].set(w_ih_t[:, :2 * H])          # r,z from input
        W = W.at[:d_in, 2 * H:3 * H].set(w_ih_t[:, 2 * H:])     # i_n
        W = W.at[Dmax:, :2 * H].set(w_hh_t[:, :2 * H])          # r,z from hidden
        W = W.at[Dmax:, 3 * H:].set(w_hh_t[:, 2 * H:])          # h_n

        b = jnp.concatenate([
            b_ih[:2 * H] + b_hh[:2 * H],   # combined r,z bias
            b_ih[2 * H:],                  # b_in
            b_hh[2 * H:],                  # b_hn (must stay separate for the n gate)
        ]).reshape(1, 4 * H)

        Ws.append(W)
        Bs.append(b)
    return {"w": jnp.stack(Ws), "b": jnp.stack(Bs)}


def _reference_forward(x, h_0, params):
    """Pure-JAX PyTorch-semantics reference using the raw (unfused) params."""
    inp = x
    outs = []
    for i, p in enumerate(params):
        h = h_0[i]
        H = h.shape[-1]
        gi = inp @ p["w_ih"].T + p["b_ih"]
        gh = h @ p["w_hh"].T + p["b_hh"]
        r = jax.nn.sigmoid(gi[:, :H] + gh[:, :H])
        z = jax.nn.sigmoid(gi[:, H:2 * H] + gh[:, H:2 * H])
        n = jnp.tanh(gi[:, 2 * H:] + r * gh[:, 2 * H:])
        h_new = (1.0 - z) * n + z * h
        inp = h_new
        outs.append(h_new)
    return inp, jnp.stack(outs)


if __name__ == "__main__":
    num_layers = 2
    input_size = 16
    rnn_size = 32   # 4H = 128 -> lane-dense merged gate tile
    batch = 8
    dropout = 0.3   # identity at inference

    key = jax.random.PRNGKey(0)
    k_params, k_x, k_h = jax.random.split(key, 3)

    params = init_stacked_gru_params(k_params, num_layers, input_size, rnn_size)
    fused = fuse_stacked_gru_params(params, input_size, rnn_size)

    x = jax.random.normal(k_x, (batch, input_size), jnp.float32)
    h_0 = jax.random.normal(k_h, (num_layers, batch, rnn_size), jnp.float32)

    out, h_1 = stacked_gru_forward(x, h_0, fused)
    out = jax.block_until_ready(out)
    h_1 = jax.block_until_ready(h_1)

    ref_out, ref_h1 = _reference_forward(x, h_0, params)
    assert out.shape == (batch, rnn_size)
    assert h_1.shape == (num_layers, batch, rnn_size)
    assert jnp.allclose(out, ref_out, atol=1e-5, rtol=1e-5)
    assert jnp.allclose(h_1, ref_h1, atol=1e-5, rtol=1e-5)

    print("KERNEL_OK")
</pallas_src>

<mosaic_0001>
module attributes {stable_mosaic.version = 11 : i64} {
  func.func @_stacked_gru_kernel(%arg0: i32, %arg1: memref<8x32xf32, #tpu.memory_space<vmem>>, %arg2: memref<1x8x32xf32, #tpu.memory_space<vmem>>, %arg3: memref<1x64x128xf32, #tpu.memory_space<vmem>>, %arg4: memref<1x1x128xf32, #tpu.memory_space<vmem>>, %arg5: memref<1x8x32xf32, #tpu.memory_space<vmem>>, %arg6: memref<8x64xf32, #tpu.memory_space<vmem>>) attributes {dimension_semantics = [#tpu.dimension_semantics<arbitrary>], iteration_bounds = array<i64: 2>, scalar_prefetch = 0 : i64, scratch_operands = 1 : i64, tpu.core_type = #tpu.core_type<tc>, window_params = [{pipeline_mode = #tpu.pipeline_mode<synchronous>, transform_indices = @transform_0, window_bounds = array<i64: 8, 32>}, {transform_indices = @transform_1, window_bounds = array<i64: 1, 8, 32>}, {transform_indices = @transform_2, window_bounds = array<i64: 1, 64, 128>}, {transform_indices = @transform_3, window_bounds = array<i64: 1, 1, 128>}, {transform_indices = @transform_4, window_bounds = array<i64: 1, 8, 32>}]} {
    %c0_i32 = arith.constant 0 : i32
    %0 = arith.cmpi eq, %arg0, %c0_i32 : i32
    %1 = arith.extui %0 : i1 to i32
    %c0_i32_0 = arith.constant 0 : i32
    %2 = arith.cmpi ne, %1, %c0_i32_0 : i32
    scf.if %2 {
      %c0_18 = arith.constant 0 : index
      %c0_19 = arith.constant 0 : index
      %41 = vector.load %arg1[%c0_18, %c0_19] : memref<8x32xf32, #tpu.memory_space<vmem>>, vector<8x32xf32>
      %c0_20 = arith.constant 0 : index
      %c0_21 = arith.constant 0 : index
      %42 = vector.load %arg6[%c0_20, %c0_21] : memref<8x64xf32, #tpu.memory_space<vmem>>, vector<8x32xf32>
      tpu.vector_store %arg6[%c0_20, %c0_21], %41 {strides = array<i32>} : memref<8x64xf32, #tpu.memory_space<vmem>>, vector<8x32xf32>,
    } else {
    }
    %c0 = arith.constant 0 : index
    %c0_1 = arith.constant 0 : index
    %c0_2 = arith.constant 0 : index
    %3 = vector.load %arg2[%c0, %c0_1, %c0_2] : memref<1x8x32xf32, #tpu.memory_space<vmem>>, vector<1x8x32xf32>
    %4 = vector.shape_cast %3 : vector<1x8x32xf32> to vector<8x32xf32>
    %c0_3 = arith.constant 0 : index
    %c32 = arith.constant 32 : index
    %5 = vector.load %arg6[%c0_3, %c32] : memref<8x64xf32, #tpu.memory_space<vmem>>, vector<8x32xf32>
    tpu.vector_store %arg6[%c0_3, %c32], %4 {strides = array<i32>} : memref<8x64xf32, #tpu.memory_space<vmem>>, vector<8x32xf32>,
    %c0_4 = arith.constant 0 : index
    %c0_5 = arith.constant 0 : index
    %6 = vector.load %arg6[%c0_4, %c0_5] : memref<8x64xf32, #tpu.memory_space<vmem>>, vector<8x64xf32>
    %c0_6 = arith.constant 0 : index
    %c0_7 = arith.constant 0 : index
    %c0_8 = arith.constant 0 : index
    %7 = vector.load %arg3[%c0_6, %c0_7, %c0_8] : memref<1x64x128xf32, #tpu.memory_space<vmem>>, vector<1x64x128xf32>
    %8 = vector.shape_cast %7 : vector<1x64x128xf32> to vector<64x128xf32>
    %cst = arith.constant dense<0.000000e+00> : vector<8x128xf32>
    %9 = tpu.matmul %6, %8, %cst {dimension_numbers = #tpu.dot_dimension_numbers<[1], [0], [0], [1], [0, 0, 1, 1], [], []>} : vector<8x64xf32>, vector<64x128xf32>, vector<8x128xf32> -> vector<8x128xf32>
    %c0_9 = arith.constant 0 : index
    %c0_10 = arith.constant 0 : index
    %c0_11 = arith.constant 0 : index
    %10 = vector.load %arg4[%c0_9, %c0_10, %c0_11] : memref<1x1x128xf32, #tpu.memory_space<vmem>>, vector<1x1x128xf32>
    %11 = vector.shape_cast %10 : vector<1x1x128xf32> to vector<1x128xf32>
    %12 = vector.broadcast %11 : vector<1x128xf32> to vector<8x128xf32>
    %13 = arith.addf %9, %12 : vector<8x128xf32>
    %14 = vector.extract_strided_slice %13 {offsets = [0, 0], sizes = [8, 32], strides = [1, 1]} : vector<8x128xf32> to vector<8x32xf32>
    %15 = arith.negf %14 : vector<8x32xf32>
    %16 = math.exp %15 : vector<8x32xf32>
    %cst_12 = arith.constant 1.000000e+00 : f32
    %17 = vector.broadcast %cst_12 : f32 to vector<8x32xf32>
    %18 = arith.addf %17, %16 : vector<8x32xf32>
    %19 = arith.divf %17, %18 : vector<8x32xf32>
    %20 = vector.extract_strided_slice %13 {offsets = [0, 32], sizes = [8, 32], strides = [1, 1]} : vector<8x128xf32> to vector<8x32xf32>
    %21 = arith.negf %20 : vector<8x32xf32>
    %22 = math.exp %21 : vector<8x32xf32>
    %cst_13 = arith.constant 1.000000e+00 : f32
    %23 = vector.broadcast %cst_13 : f32 to vector<8x32xf32>
    %24 = arith.addf %23, %22 : vector<8x32xf32>
    %25 = arith.divf %23, %24 : vector<8x32xf32>
    %26 = vector.extract_strided_slice %13 {offsets = [0, 64], sizes = [8, 32], strides = [1, 1]} : vector<8x128xf32> to vector<8x32xf32>
    %27 = vector.extract_strided_slice %13 {offsets = [0, 96], sizes = [8, 32], strides = [1, 1]} : vector<8x128xf32> to vector<8x32xf32>
    %28 = arith.mulf %19, %27 : vector<8x32xf32>
    %29 = arith.addf %26, %28 : vector<8x32xf32>
    %30 = math.tanh %29 : vector<8x32xf32>
    %31 = arith.subf %4, %30 : vector<8x32xf32>
    %32 = arith.mulf %25, %31 : vector<8x32xf32>
    %33 = arith.addf %30, %32 : vector<8x32xf32>
    %c0_14 = arith.constant 0 : index
    %c0_15 = arith.constant 0 : index
    %c0_16 = arith.constant 0 : index
    %34 = vector.load %arg5[%c0_14, %c0_15, %c0_16] : memref<1x8x32xf32, #tpu.memory_space<vmem>>, vector<1x8x32xf32>
    %35 = vector.shape_cast %34 : vector<1x8x32xf32> to vector<8x32xf32>
    %36 = vector.shape_cast %33 : vector<8x32xf32> to vector<1x8x32xf32>
    tpu.vector_store %arg5[%c0_14, %c0_15, %c0_16], %36 {strides = array<i32>} : memref<1x8x32xf32, #tpu.memory_space<vmem>>, vector<1x8x32xf32>,
    %c1_i32 = arith.constant 1 : i32
    %37 = arith.addi %arg0, %c1_i32 : i32
    %c2_i32 = arith.constant 2 : i32
    %38 = arith.cmpi slt, %37, %c2_i32 : i32
    %39 = arith.extui %38 : i1 to i32
    %c0_i32_17 = arith.constant 0 : i32
    %40 = arith.cmpi ne, %39, %c0_i32_17 : i32
    scf.if %40 {
      %c0_18 = arith.constant 0 : index
      %c0_19 = arith.constant 0 : index
      %41 = vector.load %arg6[%c0_18, %c0_19] : memref<8x64xf32, #tpu.memory_space<vmem>>, vector<8x32xf32>
      tpu.vector_store %arg6[%c0_18, %c0_19], %33 {strides = array<i32>} : memref<8x64xf32, #tpu.memory_space<vmem>>, vector<8x32xf32>,
    } else {
    }
    return
  }
  func.func @transform_0(%arg0: i32) -> (i32, i32) {
    %c0_i32 = arith.constant 0 : i32
    %c0_i32_0 = arith.constant 0 : i32
    %c0_i32_1 = arith.constant 0 : i32
    return %c0_i32, %c0_i32_0 : i32, i32
  }
  func.func @transform_1(%arg0: i32) -> (i32, i32, i32) {
    %c0_i32 = arith.constant 0 : i32
    %c0_i32_0 = arith.constant 0 : i32
    %c0_i32_1 = arith.constant 0 : i32
    return %arg0, %c0_i32, %c0_i32_0 : i32, i32, i32
  }
  func.func @transform_2(%arg0: i32) -> (i32, i32, i32) {
    %c0_i32 = arith.constant 0 : i32
    %c0_i32_0 = arith.constant 0 : i32
    %c0_i32_1 = arith.constant 0 : i32
    return %arg0, %c0_i32, %c0_i32_0 : i32, i32, i32
  }
  func.func @transform_3(%arg0: i32) -> (i32, i32, i32) {
    %c0_i32 = arith.constant 0 : i32
    %c0_i32_0 = arith.constant 0 : i32
    %c0_i32_1 = arith.constant 0 : i32
    return %arg0, %c0_i32, %c0_i32_0 : i32, i32, i32
  }
  func.func @transform_4(%arg0: i32) -> (i32, i32, i32) {
    %c0_i32 = arith.constant 0 : i32
    %c0_i32_0 = arith.constant 0 : i32
    %c0_i32_1 = arith.constant 0 : i32
    return %arg0, %c0_i32, %c0_i32_0 : i32, i32, i32
  }
}

</mosaic_0001>

<llo_original>
// kernel: tpu_custom_call.1
$region0: #{tpu_custom_call.1}
  #allocation0 [shape = 'u32[]', space=smem, size = 0x4, offset = 0x4, fixed_abs, tag = 'smem constant byte address 0x4 - core index']
  #allocation1 [shape = 'u32[144,128]{1,0:T(1,128)}', space=vmem, size = 0x12000, scoped, tag = 'internal scratch']
  #allocation2 [shape = 'f32[8,64]{1,0:T(8,128)}', space=vmem, size = 0x1000, scoped, tag = 'scratch operand']
  %s0 = inlined_call_operand.hbm [shape: f32[8,32], index: 0, kind: input, shape index: {}]
  %s1 = inlined_call_operand.hbm [shape: f32[2,8,32], index: 1, kind: input, shape index: {}]
  %s2 = inlined_call_operand.hbm [shape: f32[2,64,128], index: 2, kind: input, shape index: {}]
  %s3 = inlined_call_operand.vmem [shape: f32[2,1,128], index: 3, kind: input, shape index: {}]
  %s4 = inlined_call_operand.hbm [shape: f32[2,8,32], index: 4, kind: output, shape index: {}]
  %s5 = sld [smem:[#allocation0]]
  $region69: #{tpu_custom_call.1} parent=0
    _
  %s7 = ssub.s32 1, %s5
  %s8 = scalar_select 0, %s7, %s5
  $region1: #{tpu_custom_call.1} parent=0
    #allocation3 [shape = 'u8[4096]{0}', space=vmem, size = 0x1000, scoped, tag = 'input window, operand 0, single buffered']
    #allocation4 [shape = 's32[2]{0}', space=sflag, size = 0x8, scoped, tag = 'scoped memory for tpu_custom_call.1']
    #allocation5 [shape = 's32[2]{0}', space=sflag, size = 0x8, scoped, tag = 'scoped memory for tpu_custom_call.1']
    #allocation6 [shape = 'u8[8192]{0}', space=vmem, size = 0x2000, scoped, tag = 'input window, operand 1']
    #allocation7 [shape = 's32[2]{0}', space=sflag, size = 0x8, scoped, tag = 'scoped memory for tpu_custom_call.1']
    #allocation8 [shape = 'u8[65536]{0}', space=vmem, size = 0x10000, scoped, tag = 'input window, operand 2']
    #allocation9 [shape = 'u8[8192]{0}', space=vmem, size = 0x2000, scoped, tag = 'output window, operand 0']
    %9 = vsyncpa [#allocation4], 0
    %10 = vsyncpa [#allocation7], 0
    %s11 = scalar_lea.sflag [#allocation7], 1
    %12 = vsyncpa %s11, 0
    %13 = vsyncpa [#allocation5], 0
    %s14 = scalar_lea.sflag [#allocation5], 1
    %15 = vsyncpa %s14, 0
    loop: start=0, step=1, limit=4
    $region2: #{tpu_custom_call.1} parent=1 // loop_pre_header
      _
    $region3: #{tpu_custom_call.1} parent=1 // loop_header
      %s17 = sphi 0, %s21
      %p18 = scmp.ge.s32.totalorder %s17, 4
      %s25 = sphi 0, %s25
      %s27 = sphi 0, %s25
      %s28 = sphi 0, %s27
      %s42 = sphi 0, %s28
      %s48 = sphi 0, %s50
      %s51 = sphi 0, %s48
      %s52 = sphi 0, %s51
      %s68 = sphi 0, %s52
      %s74 = sphi 0, %s76
      %s77 = sphi 0, %s74
      %s78 = sphi 0, %s77
      %s94 = sphi 0, %s78
      %s100 = sphi 0, %s102
      %s103 = sphi 0, %s100
      %s104 = sphi 0, %s103
      %s120 = sphi 0, %s104
      %s126 = sphi 0, %s128
      %s129 = sphi 0, %s126
      %s130 = sphi 0, %s129
      %s146 = sphi 0, %s130
    $region4: #{tpu_custom_call.1} parent=1 // loop_header_branch
      %20 = sbr.rel (%p18) target = $region8
    $region5: #{tpu_custom_call.1} parent=1 // loop_body
      %s22 = ssub.s32 %s17, 1
      %s23 = ssub.s32 %s17, 2
      %s24 = sadd.s32 %s17, 1
      %s26 = sadd.s32 %s25, 1
      %p29 = scmp.eq.s32.totalorder %s17, 1
      %p30 = scmp.ne.s32.totalorder %s25, %s27
      %p31 = scmp.eq.s32.totalorder %s17, 0
      %p32 = por %p30, %p31
      %p33 = scmp.ne.s32.totalorder %s25, %s27
      %p34 = scmp.eq.s32.totalorder %s22, 1
      %p35 = por %p33, %p34
      %p36 = scmp.ne.s32.totalorder %s27, %s28
      %p37 = scmp.eq.s32.totalorder %s22, 0
      %p38 = por %p36, %p37
      %p39 = scmp.ne.s32.totalorder %s27, %s28
      %p40 = scmp.eq.s32.totalorder %s23, 1
      %p41 = por %p39, %p40
      %p43 = scmp.ne.s32.totalorder %s28, %s42
      %p44 = scmp.eq.s32.totalorder %s23, 0
      %p45 = por %p43, %p44
      %s46 = ssub.s32 %s17, %s24
      %p47 = scmp.eq.s32.totalorder %s46, 0
      %s49 = sadd.s32 %s48, 1
      %s50 = scalar_select %p47, %s48, %s49
      %p53 = pneg %p47
      %p54 = scmp.eq.s32.totalorder %s17, 1
      %p55 = por %p53, %p54
      %p56 = scmp.ne.s32.totalorder %s48, %s51
      %p57 = scmp.eq.s32.totalorder %s17, 0
      %p58 = por %p56, %p57
      %p59 = scmp.ne.s32.totalorder %s48, %s51
      %p60 = scmp.eq.s32.totalorder %s22, 1
      %p61 = por %p59, %p60
      %p62 = scmp.ne.s32.totalorder %s51, %s52
      %p63 = scmp.eq.s32.totalorder %s22, 0
      %p64 = por %p62, %p63
      %p65 = scmp.ne.s32.totalorder %s51, %s52
      %p66 = scmp.eq.s32.totalorder %s23, 1
      %p67 = por %p65, %p66
      %p69 = scmp.ne.s32.totalorder %s52, %s68
      %p70 = scmp.eq.s32.totalorder %s23, 0
      %p71 = por %p69, %p70
      %s72 = ssub.s32 %s17, %s24
      %p73 = scmp.eq.s32.totalorder %s72, 0
      %s75 = sadd.s32 %s74, 1
      %s76 = scalar_select %p73, %s74, %s75
      %p79 = pneg %p73
      %p80 = scmp.eq.s32.totalorder %s17, 1
      %p81 = por %p79, %p80
      %p82 = scmp.ne.s32.totalorder %s74, %s77
      %p83 = scmp.eq.s32.totalorder %s17, 0
      %p84 = por %p82, %p83
      %p85 = scmp.ne.s32.totalorder %s74, %s77
      %p86 = scmp.eq.s32.totalorder %s22, 1
      %p87 = por %p85, %p86
      %p88 = scmp.ne.s32.totalorder %s77, %s78
      %p89 = scmp.eq.s32.totalorder %s22, 0
      %p90 = por %p88, %p89
      %p91 = scmp.ne.s32.totalorder %s77, %s78
      %p92 = scmp.eq.s32.totalorder %s23, 1
      %p93 = por %p91, %p92
      %p95 = scmp.ne.s32.totalorder %s78, %s94
      %p96 = scmp.eq.s32.totalorder %s23, 0
      %p97 = por %p95, %p96
      %s98 = ssub.s32 %s17, %s24
      %p99 = scmp.eq.s32.totalorder %s98, 0
      %s101 = sadd.s32 %s100, 1
      %s102 = scalar_select %p99, %s100, %s101
      %p105 = pneg %p99
      %p106 = scmp.eq.s32.totalorder %s17, 1
      %p107 = por %p105, %p106
      %p108 = scmp.ne.s32.totalorder %s100, %s103
      %p109 = scmp.eq.s32.totalorder %s17, 0
      %p110 = por %p108, %p109
      %p111 = scmp.ne.s32.totalorder %s100, %s103
      %p112 = scmp.eq.s32.totalorder %s22, 1
      %p113 = por %p111, %p112
      %p114 = scmp.ne.s32.totalorder %s103, %s104
      %p115 = scmp.eq.s32.totalorder %s22, 0
      %p116 = por %p114, %p115
      %p117 = scmp.ne.s32.totalorder %s103, %s104
      %p118 = scmp.eq.s32.totalorder %s23, 1
      %p119 = por %p117, %p118
      %p121 = scmp.ne.s32.totalorder %s104, %s120
      %p122 = scmp.eq.s32.totalorder %s23, 0
      %p123 = por %p121, %p122
      %s124 = ssub.s32 %s17, %s24
      %p125 = scmp.eq.s32.totalorder %s124, 0
      %s127 = sadd.s32 %s126, 1
      %s128 = scalar_select %p125, %s126, %s127
      %p131 = pneg %p125
      %p132 = scmp.eq.s32.totalorder %s17, 1
      %p133 = por %p131, %p132
      %p134 = scmp.ne.s32.totalorder %s126, %s129
      %p135 = scmp.eq.s32.totalorder %s17, 0
      %p136 = por %p134, %p135
      %p137 = scmp.ne.s32.totalorder %s126, %s129
      %p138 = scmp.eq.s32.totalorder %s22, 1
      %p139 = por %p137, %p138
      %p140 = scmp.ne.s32.totalorder %s129, %s130
      %p141 = scmp.eq.s32.totalorder %s22, 0
      %p142 = por %p140, %p141
      %p143 = scmp.ne.s32.totalorder %s129, %s130
      %p144 = scmp.eq.s32.totalorder %s23, 1
      %p145 = por %p143, %p144
      %p147 = scmp.ne.s32.totalorder %s130, %s146
      %p148 = scmp.eq.s32.totalorder %s23, 0
      %p149 = por %p147, %p148
      %p150 = scmp.le.s32.totalorder 1, %s17
      %p151 = scmp.lt.s32.totalorder %s17, 3
      %p152 = pnand %p150, %p151
      %p153 = pneg %p152
      // Predicated region
      $region9: #{tpu_custom_call.1} parent=5 // pred_check
        _
      $region10: #{tpu_custom_call.1} parent=5 // pred_check_branch
        %155 = sbr.rel (%p152) target = $region12
      $region11: #{tpu_custom_call.1} parent=5 // pred_region
        %s156 = ssub.s32 %s17, 1
        // Predicated region
        $region13: #{tpu_custom_call.1} parent=11 // pred_check
          %p157 = pneg %p38
        $region14: #{tpu_custom_call.1} parent=11 // pred_check_branch
          %159 = sbr.rel (%p157) target = $region16
        $region15: #{tpu_custom_call.1} parent=11 // pred_region
          %s161 = ssub.s32 128, 128
          %162 = vsyncadd [#allocation4], %s161
          %s164 = sshll.u32 [#allocation3], 4
          %s165 = int_to_ptr.vmem [resolvable:$true] %s164
          %167 = dma.hbm_to_vmem [thread:$0]  %s0, 128, %s165, [#allocation4]
        $region16: #{tpu_custom_call.1} parent=11 // pred_fallthru
          _
      $region12: #{tpu_custom_call.1} parent=5 // pred_fallthru
        _
      %p168 = scmp.lt.s32.totalorder %s17, 2
      // Predicated region
      $region17: #{tpu_custom_call.1} parent=5 // pred_check
        %p169 = pneg %p168
      $region18: #{tpu_custom_call.1} parent=5 // pred_check_branch
        %171 = sbr.rel (%p169) target = $region20
      $region19: #{tpu_custom_call.1} parent=5 // pred_region
        // Predicated region
        $region21: #{tpu_custom_call.1} parent=19 // pred_check
          %p172 = pneg %p58
        $region22: #{tpu_custom_call.1} parent=19 // pred_check_branch
          %174 = sbr.rel (%p172) target = $region24
        $region23: #{tpu_custom_call.1} parent=19 // pred_region
          %s175 = sand.u32 %s17, 1
          %s176 = scalar_lea.sflag [#allocation7], %s175
          %s177 = sand.u32 %s48, 1
          %s178 = smul.addr %s177, 8
          %s179 = scalar_lea.vmem [#allocation6], %s178
          %s181 = ssub.s32 128, 128
          %182 = vsyncadd %s176, %s181
          %s183 = smul.addr %s17, 128
          %s184 = scalar_lea.hbm %s1, %s183
          %s186 = sshll.u32 %s179, 4
          %s187 = int_to_ptr.vmem [resolvable:$true] %s186
          %189 = dma.hbm_to_vmem [thread:$0]  %s184, 128, %s187, %s176
        $region24: #{tpu_custom_call.1} parent=19 // pred_fallthru
          _
        // Predicated region
        $region25: #{tpu_custom_call.1} parent=19 // pred_check
          %p190 = pneg %p84
        $region26: #{tpu_custom_call.1} parent=19 // pred_check_branch
          %192 = sbr.rel (%p190) target = $region28
        $region27: #{tpu_custom_call.1} parent=19 // pred_region
          %s193 = sand.u32 %s17, 1
          %s194 = scalar_lea.sflag [#allocation7], %s193
          %s195 = sand.u32 %s74, 1
          %s196 = smul.addr %s195, 64
          %s197 = scalar_lea.vmem [#allocation8], %s196
          %s199 = ssub.s32 1024, 1024
          %200 = vsyncadd %s194, %s199
          %s201 = smul.addr %s17, 8
          %s202 = smul.addr %s201, 128
          %s203 = scalar_lea.hbm %s2, %s202
          %s204 = sshll.u32 %s197, 4
          %s205 = int_to_ptr.vmem [resolvable:$true] %s204
          %210 = dma.hbm_to_vmem [thread:$0]  %s203, 1024, %s205, %s194, 128, 128, 8
        $region28: #{tpu_custom_call.1} parent=19 // pred_fallthru
          _
        // Predicated region
        $region29: #{tpu_custom_call.1} parent=19 // pred_check
          %p211 = pneg %p110
        $region30: #{tpu_custom_call.1} parent=19 // pred_check_branch
          %213 = sbr.rel (%p211) target = $region32
        $region31: #{tpu_custom_call.1} parent=19 // pred_region
          %p214 = scmp.lt.s32.totalorder %s17, 1
          %s215 = scalar_select %p214, %s17, 1
          %s216 = scalar_lea.vmem %s3, %s215
        $region32: #{tpu_custom_call.1} parent=19 // pred_fallthru
          _
      $region20: #{tpu_custom_call.1} parent=5 // pred_fallthru
        _
      %p217 = scmp.le.s32.totalorder 1, %s17
      %p218 = scmp.lt.s32.totalorder %s17, 3
      %p219 = pnand %p217, %p218
      %p220 = pneg %p219
      // Predicated region
      $region33: #{tpu_custom_call.1} parent=5 // pred_check
        _
      $region34: #{tpu_custom_call.1} parent=5 // pred_check_branch
        %222 = sbr.rel (%p219) target = $region36
      $region35: #{tpu_custom_call.1} parent=5 // pred_region
        %s223 = ssub.s32 %s17, 1
        // Predicated region
        $region37: #{tpu_custom_call.1} parent=35 // pred_check
          %p224 = pneg %p38
        $region38: #{tpu_custom_call.1} parent=35 // pred_check_branch
          %226 = sbr.rel (%p224) target = $region40
        $region39: #{tpu_custom_call.1} parent=35 // pred_region
          %227 = dma.done [#allocation4], 128
        $region40: #{tpu_custom_call.1} parent=35 // pred_fallthru
          _
        %s228 = sand.u32 %s22, 1
        %s229 = scalar_lea.sflag [#allocation7], %s228
        %s230 = sand.u32 %s51, 1
        %s231 = smul.addr %s230, 8
        %s232 = scalar_lea.vmem [#allocation6], %s231
        // Predicated region
        $region41: #{tpu_custom_call.1} parent=35 // pred_check
          %p233 = pneg %p64
        $region42: #{tpu_custom_call.1} parent=35 // pred_check_branch
          %235 = sbr.rel (%p233) target = $region44
        $region43: #{tpu_custom_call.1} parent=35 // pred_region
          %236 = dma.done %s229, 128
        $region44: #{tpu_custom_call.1} parent=35 // pred_fallthru
          _
        %s237 = sand.u32 %s22, 1
        %s238 = scalar_lea.sflag [#allocation7], %s237
        %s239 = sand.u32 %s77, 1
        %s240 = smul.addr %s239, 64
        %s241 = scalar_lea.vmem [#allocation8], %s240
        // Predicated region
        $region45: #{tpu_custom_call.1} parent=35 // pred_check
          %p242 = pneg %p90
        $region46: #{tpu_custom_call.1} parent=35 // pred_check_branch
          %244 = sbr.rel (%p242) target = $region48
        $region47: #{tpu_custom_call.1} parent=35 // pred_region
          %245 = dma.done %s238, 1024
        $region48: #{tpu_custom_call.1} parent=35 // pred_fallthru
          _
        %p246 = pneg %p38
        %p247 = pneg %p35
        %s248 = sand.u32 %s22, 1
        %s249 = scalar_lea.sflag [#allocation7], %s248
        %s250 = sand.u32 %s51, 1
        %s251 = smul.addr %s250, 8
        %s252 = scalar_lea.vmem [#allocation6], %s251
        %p253 = pneg %p64
        %p254 = pneg %p61
        %s255 = sand.u32 %s22, 1
        %s256 = scalar_lea.sflag [#allocation7], %s255
        %s257 = sand.u32 %s77, 1
        %s258 = smul.addr %s257, 64
        %s259 = scalar_lea.vmem [#allocation8], %s258
        %p260 = pneg %p90
        %p261 = pneg %p87
        %p262 = scmp.lt.s32.totalorder %s22, 1
        %s263 = scalar_select %p262, %s22, 1
        %s264 = scalar_lea.vmem %s3, %s263
        %p265 = pneg %p116
        %p266 = pneg %p113
        %p267 = pneg %p142
        %p268 = pneg %p139
        %s269 = sand.u32 %s129, 1
        %s270 = scalar_lea.sflag [#allocation5], %s269
        %s271 = sand.u32 %s129, 1
        %s272 = smul.addr %s271, 8
        %s273 = scalar_lea.vmem [#allocation9], %s272
        %p274 = scmp.lt.s32.totalorder %s22, 1
        %s275 = scalar_select %p274, %s22, 1
        %s276 = scalar_lea.vmem %s3, %s275
        %p277 = scmp.eq.s32.totalorder %s22, 0
        // Predicated region
        $region49: #{tpu_custom_call.1} parent=35 // pred_check
          %p278 = pneg %p277
        $region50: #{tpu_custom_call.1} parent=35 // pred_check_branch
          %280 = sbr.rel (%p278) target = $region52
        $region51: #{tpu_custom_call.1} parent=35 // pred_region
          %v281 = vld [vmem:[#allocation3] sm:$0xff]
          %vm282 = vcmask 261120
          %283 = vst.msk [vmem:[#allocation2] sm:$0xff] %vm282, %v281
        $region52: #{tpu_custom_call.1} parent=35 // pred_fallthru
          _
        %v284 = vld [vmem:[%s232] sm:$0xff]
        %286 = vrot.lane.b32.xlu0 %v284, 32
        %v287 = vpop.permute.xlu0 %286
        %vm289 = vcmask 523520
        %290 = vst.msk [vmem:[#allocation2] sm:$0xff] %vm289, %v287
        %v291 = vld [vmem:[#allocation2] sm:$0xff]
        %v292 = vld [vmem:[%s241] sm:$0xff]
        %v293 = vld [vmem:[%s241 + $0x8] sm:$0xff]
        %v294 = vld [vmem:[%s241 + $0x10] sm:$0xff]
        %v295 = vld [vmem:[%s241 + $0x18] sm:$0xff]
        %v296 = vld [vmem:[%s241 + $0x20] sm:$0xff]
        %v297 = vld [vmem:[%s241 + $0x28] sm:$0xff]
        %v298 = vld [vmem:[%s241 + $0x30] sm:$0xff]
        %v299 = vld [vmem:[%s241 + $0x38] sm:$0xff]
        %v300 = vld [vmem:[%s276] sm:$0x1]
        %v302 = vlaneseq
        %v303 = vshrl.u32 %v302, 7
        %v304 = vsub.s32 0, %v303
        %v305 = vrot.slane %v300, %v304
        %vm307 = vcmask 523264
        %v309 = vsel %vm307, %v291, 0
        %311 = vmatprep.subr.mxu0 0.0
        %312 = vmatpush1.msra.mxu0 %v292
        %313 = vmatprep.subr.mxu0 0.0
        %314 = vmatpush1.msra.mxu0 %v293
        %315 = vmatprep.subr.mxu0 0.0
        %316 = vmatpush1.msra.mxu0 %v294
        %317 = vmatprep.subr.mxu0 0.0
        %318 = vmatpush1.msra.mxu0 %v295
        %319 = vmatprep.subr.mxu0 0.0
        %320 = vmatpush1.msra.mxu0 %v296
        %321 = vmatprep.subr.mxu0 0.0
        %322 = vmatpush1.msra.mxu0 %v297
        %323 = vmatprep.subr.mxu0 0.0
        %324 = vmatpush1.msra.mxu0 %v298
        %325 = vmatprep.subr.mxu0 0.0
        %326 = vmatpush1.msra.mxu0 %v299
        %327 = vmatprep.subr.mxu0 0.0
        %328 = vmatpush1.msra.mxu0 0.0
        %329 = vmatprep.subr.mxu0 0.0
        %330 = vmatpush1.msra.mxu0 0.0
        %331 = vmatprep.subr.mxu0 0.0
        %332 = vmatpush1.msra.mxu0 0.0
        %333 = vmatprep.subr.mxu0 0.0
        %334 = vmatpush1.msra.mxu0 0.0
        %335 = vmatprep.subr.mxu0 0.0
        %336 = vmatpush1.msra.mxu0 0.0
        %337 = vmatprep.subr.mxu0 0.0
        %338 = vmatpush1.msra.mxu0 0.0
        %339 = vmatprep.subr.mxu0 0.0
        %340 = vmatpush1.msra.mxu0 0.0
        %341 = vmatprep.subr.mxu0 0.0
        %342 = vmatpush1.msra.mxu0 0.0
        %343 = vmatprep.subr.mxu0 0.0
        %344 = vmatpush1.msra.mxu0 0.0
        %345 = vmatprep.subr.mxu0 0.0
        %346 = vmatpush1.msra.mxu0 0.0
        %347 = vmatprep.subr.mxu0 0.0
        %348 = vmatpush1.msra.mxu0 0.0
        %349 = vmatprep.subr.mxu0 0.0
        %350 = vmatpush1.msra.mxu0 0.0
        %351 = vmatprep.subr.mxu0 0.0
        %352 = vmatpush1.msra.mxu0 0.0
        %353 = vmatprep.subr.mxu0 0.0
        %354 = vmatpush1.msra.mxu0 0.0
        %355 = vmatprep.subr.mxu0 0.0
        %356 = vmatpush1.msra.mxu0 0.0
        %357 = vmatprep.subr.mxu0 0.0
        %358 = vmatpush1.msra.mxu0 0.0
        %359 = vmatprep.subr.mxu0 0.0
        %360 = vmatpush1.msra.mxu0 0.0
        %361 = vmatprep.subr.mxu0 0.0
        %362 = vmatpush1.msra.mxu0 0.0
        %363 = vmatprep.subr.mxu0 0.0
        %364 = vmatpush1.msra.mxu0 0.0
        %365 = vmatprep.subr.mxu0 0.0
        %366 = vmatpush1.msra.mxu0 0.0
        %367 = vmatprep.subr.mxu0 0.0
        %368 = vmatpush1.msra.mxu0 0.0
        %369 = vmatprep.subr.mxu0 0.0
        %370 = vmatpush1.msra.mxu0 0.0
        %371 = vmatprep.subr.mxu0 0.0
        %372 = vmatpush1.msra.mxu0 0.0
        %373 = vmatprep.subr.mxu0 0.0
        %374 = vmatpush1.msra.mxu0 0.0
        %375 = vmatprep.mubr.f32.mxu0 0.0
        %376 = vmatmul.mubr.f32.gmra.mrb[0].mxu0 %v309
        %v377 = vpop.f32.mrb[0].mxu0
        %v378 = vadd.f32 %v305, %v377
        %v379 = vpop.f32.mrb[0].mxu0
        %380 = vdwg.mxu0
        %v381 = vxor.u32 %v378, 2147483648
        %v382 = vmul.f32 %v381, 1.442695
        %v383 = vpow.pop %v382
        %v384 = vadd.f32 %v383, 1.0
        %v385 = vrcp.pop %v384
        %v386 = vmul.f32 1.0, %v385
        %388 = vrot.lane.b32.xlu0 %v378, 32
        %v389 = vpop.permute.xlu0 %388
        %v391 = vmul.f32 %v386, %v389
        %393 = vrot.lane.b32.xlu0 %v391, 64
        %v394 = vpop.permute.xlu0 %393
        %v396 = vadd.f32 %v378, %v394
        %v397 = vtanh.pop %v396
        %399 = vrot.lane.b32.xlu0 %v397, 64
        %v400 = vpop.permute.xlu0 %399
        %v402 = vsub.f32 %v284, %v400
        %404 = vrot.lane.b32.xlu0 %v402, 32
        %v405 = vpop.permute.xlu0 %404
        %v407 = vmul.f32 %v386, %v405
        %409 = vrot.lane.b32.xlu0 %v407, 32
        %v410 = vpop.permute.xlu0 %409
        %v412 = vadd.f32 %v397, %v410
        %414 = vrot.lane.b32.xlu0 %v412, 64
        %v415 = vpop.permute.xlu0 %414
        %vm417 = vcmask 261120
        %418 = vst.msk [vmem:[%s273] sm:$0xff] %vm417, %v415
        %s419 = sadd.s32 %s22, 1
        %p420 = scmp.lt.s32.totalorder %s419, 2
        // Predicated region
        $region53: #{tpu_custom_call.1} parent=35 // pred_check
          %p421 = pneg %p420
        $region54: #{tpu_custom_call.1} parent=35 // pred_check_branch
          %423 = sbr.rel (%p421) target = $region56
        $region55: #{tpu_custom_call.1} parent=35 // pred_region
          %424 = vst.msk [vmem:[#allocation2] sm:$0xff] %vm417, %v415
        $region56: #{tpu_custom_call.1} parent=35 // pred_fallthru
          _
        %s425 = sand.u32 %s129, 1
        %s426 = scalar_lea.sflag [#allocation5], %s425
        %s427 = sand.u32 %s129, 1
        %s428 = smul.addr %s427, 8
        %s429 = scalar_lea.vmem [#allocation9], %s428
        // Predicated region
        $region57: #{tpu_custom_call.1} parent=35 // pred_check
          %p430 = pneg %p139
        $region58: #{tpu_custom_call.1} parent=35 // pred_check_branch
          %432 = sbr.rel (%p430) target = $region60
        $region59: #{tpu_custom_call.1} parent=35 // pred_region
          %s434 = ssub.s32 128, 128
          %435 = vsyncadd %s426, %s434
          %s436 = smul.addr %s22, 128
          %s437 = scalar_lea.hbm %s4, %s436
          %s439 = sshll.u32 %s429, 4
          %s440 = int_to_ptr.vmem [resolvable:$true] %s439
          %442 = dma.vmem_to_hbm [thread:$0]  %s440, 128, %s437, %s426
        $region60: #{tpu_custom_call.1} parent=35 // pred_fallthru
          _
      $region36: #{tpu_custom_call.1} parent=5 // pred_fallthru
        _
      %p443 = scmp.le.s32.totalorder 2, %s17
      // Predicated region
      $region61: #{tpu_custom_call.1} parent=5 // pred_check
        %p444 = pneg %p443
      $region62: #{tpu_custom_call.1} parent=5 // pred_check_branch
        %446 = sbr.rel (%p444) target = $region64
      $region63: #{tpu_custom_call.1} parent=5 // pred_region
        %s447 = ssub.s32 %s17, 2
        // Predicated region
        $region65: #{tpu_custom_call.1} parent=63 // pred_check
          %p448 = pneg %p145
        $region66: #{tpu_custom_call.1} parent=63 // pred_check_branch
          %450 = sbr.rel (%p448) target = $region68
        $region67: #{tpu_custom_call.1} parent=63 // pred_region
          %s451 = sand.u32 %s130, 1
          %s452 = scalar_lea.sflag [#allocation5], %s451
          %s453 = sand.u32 %s130, 1
          %s454 = smul.addr %s453, 8
          %s455 = scalar_lea.vmem [#allocation9], %s454
          %456 = dma.done %s452, 128
        $region68: #{tpu_custom_call.1} parent=63 // pred_fallthru
          _
      $region64: #{tpu_custom_call.1} parent=5 // pred_fallthru
        _
    $region6: #{tpu_custom_call.1} parent=1 // loop_footer
      %s21 = sadd.s32 1, %s17
    $region7: #{tpu_custom_call.1} parent=1 // loop_footer_branch
      %16 = sbr.rel target = $region3
    $region8: #{tpu_custom_call.1} parent=1 // loop_exit
      _
    %457 = vsyncpa [#allocation4], 1
    %s458 = scalar_lea.sflag [#allocation4], 1
    %459 = vsyncpa %s458, 1
    %460 = vsyncpa [#allocation7], 1
    %s461 = scalar_lea.sflag [#allocation7], 1
    %462 = vsyncpa %s461, 1
    %463 = vsyncpa [#allocation5], 1
    %s464 = scalar_lea.sflag [#allocation5], 1
    %465 = vsyncpa %s464, 1

</llo_original>
